<compile_context>
chip_gen: v5e
topology: v5e:2x2
jax: 0.10.0
libtpu: 0.0.40
codegen_flags: <defaults>
</compile_context>

<pallas_src>
import jax
import jax.numpy as jnp
from jax.experimental import pallas as pl
from jax.experimental.pallas import tpu as pltpu


def _round_up(n, m):
    return ((n + m - 1) // m) * m


def _pick_tile(total, unit, target):
    """Largest multiple of `unit` that divides `total` and is <= max(target, unit)."""
    n = total // unit
    t = max(target // unit, 1)
    best = 1
    for d in range(1, n + 1):
        if n % d == 0 and d <= t:
            best = d
    return best * unit


# ----------------------------------------------------------------------------
# Kernels
# ----------------------------------------------------------------------------
def dense_kernel(x_ref, w_ref, b_ref, o_ref):
    # Resident-D path: one fused MXU matmul + f32 bias add per
    # (hidden-tile, batch-tile). The W column tile is resident across the
    # inner batch sweep (its block index only depends on the outer axis).
    o_ref[...] = (
        jnp.dot(x_ref[...], w_ref[...], preferred_element_type=jnp.float32)
        + b_ref[...]
    ).astype(o_ref.dtype)


def dense_kernel_ktiled(x_ref, w_ref, b_ref, o_ref, acc_ref):
    # Large-D path: contraction dim tiled on the last ("arbitrary") grid axis
    # with an f32 VMEM accumulator; bias add + store on the final K step.
    k = pl.program_id(2)

    @pl.when(k == 0)
    def _():
        acc_ref[...] = jnp.zeros_like(acc_ref)

    acc_ref[...] += jnp.dot(
        x_ref[...], w_ref[...], preferred_element_type=jnp.float32
    )

    @pl.when(k == pl.num_programs(2) - 1)
    def _():
        o_ref[...] = (acc_ref[...] + b_ref[...]).astype(o_ref.dtype)


# ----------------------------------------------------------------------------
# Weight preparation (run ONCE per weight set)
# ----------------------------------------------------------------------------
def fold_dense_params(wv_t, bv, w1, w2, b, *, compute_dtype=jnp.bfloat16):
    """Fold the Linear + two output matmuls into a single padded affine map.

    out = x @ W1 + (x @ Wv^T + bv) @ W2 + b
        = x @ (W1 + Wv^T @ W2) + (bv @ W2 + b)

    Valid only while activation == identity. The fold is done in f32; the
    lane-dense padded copies (Dp, Hp multiples of 128) are built HERE so that
    per-call HBM traffic is only the kernel's own streams.
    """
    D, H = w1.shape
    w_eff = (w1.astype(jnp.float32)
             + wv_t.astype(jnp.float32) @ w2.astype(jnp.float32))       # [D, H]
    b_eff = (jnp.reshape(bv, (1, -1)).astype(jnp.float32) @ w2.astype(jnp.float32)
             + jnp.reshape(b, (1, -1)).astype(jnp.float32))             # [1, H]

    Dp = _round_up(D, 128)
    Hp = _round_up(H, 128)
    w_pad = jnp.zeros((Dp, Hp), compute_dtype).at[:D, :H].set(
        w_eff.astype(compute_dtype))
    b_pad = jnp.zeros((1, Hp), jnp.float32).at[:, :H].set(b_eff)  # bias stays f32
    return {"w": w_pad, "b": b_pad, "D": D, "H": H, "compute_dtype": compute_dtype}


# ----------------------------------------------------------------------------
# Forward
# ----------------------------------------------------------------------------
def dense_forward(x, params, *, tm=256, tn=512, tk=2048, out_dtype=jnp.float32):
    """x: [B, D] -> [B, H] in out_dtype.  `params` comes from fold_dense_params."""
    w_pad, b_pad = params["w"], params["b"]
    D, H = params["D"], params["H"]
    cdtype = params["compute_dtype"]
    B = x.shape[0]
    Dp, Hp = w_pad.shape

    # Tiling: Hp is already a multiple of 128; TN is a divisor of Hp, so waste
    # is capped at <128 columns. Batch padded to a sublane multiple of 8.
    Bp = _round_up(B, 8)
    TM = _pick_tile(Bp, 8, tm)
    TN = _pick_tile(Hp, 128, tn)

    # Fast path: no x pad when already aligned (cast only, which XLA fuses).
    if B == Bp and D == Dp:
        xp = x.astype(cdtype)
    else:
        xp = jnp.zeros((Bp, Dp), cdtype).at[:B, :D].set(x.astype(cdtype))

    itemsize = jnp.dtype(cdtype).itemsize
    out_itemsize = jnp.dtype(out_dtype).itemsize

    def vmem_bytes(kdim, acc=False):
        # double-buffered inputs + double-buffered output (+ f32 accumulator)
        n = 2 * (TM * kdim * itemsize + kdim * TN * itemsize + TN * 4)
        n += 2 * TM * TN * out_itemsize
        if acc:
            n += TM * TN * 4
        return n

    # Safe budget across generations (v7x: 64 MiB physical / 32 MiB default
    # scoped; v5e: 16 MiB default scoped). Above it, switch to K-tiling.
    K_TILE_THRESHOLD = 40 * 1024 * 1024
    VMEM_CAP = 100 * 1024 * 1024

    cost = pl.CostEstimate(
        flops=int(2 * Bp * Dp * Hp),
        transcendentals=0,
        bytes_accessed=int((Bp * Dp + Dp * Hp) * itemsize + Hp * 4
                           + Bp * Hp * out_itemsize),
    )

    if vmem_bytes(Dp) <= K_TILE_THRESHOLD:
        # Resident-D single pass. Inner grid axis = batch, so the (Dp, TN)
        # weight tile and bias tile stay resident in VMEM while x streams.
        grid = (Hp // TN, Bp // TM)
        out = pl.pallas_call(
            dense_kernel,
            out_shape=jax.ShapeDtypeStruct((Bp, Hp), out_dtype),
            grid_spec=pltpu.PrefetchScalarGridSpec(
                num_scalar_prefetch=0,
                grid=grid,
                in_specs=[
                    pl.BlockSpec((TM, Dp), lambda j, i: (i, 0)),   # x (streams)
                    pl.BlockSpec((Dp, TN), lambda j, i: (0, j)),   # W (resident over i)
                    pl.BlockSpec((1, TN), lambda j, i: (0, j)),    # bias (resident)
                ],
                out_specs=pl.BlockSpec((TM, TN), lambda j, i: (i, j)),
            ),
            compiler_params=pltpu.CompilerParams(
                dimension_semantics=("parallel", "parallel"),
                vmem_limit_bytes=min(int(vmem_bytes(Dp) * 1.5) + (1 << 20), VMEM_CAP),
            ),
            cost_estimate=cost,
        )(xp, w_pad, b_pad)
    else:
        # K-tiled accumulator path for large D (keeps double buffering, avoids
        # VMEM OOM on v7x / small scoped limits on v5e).
        n = Dp // 128
        TK = 128
        for d in range(n, 0, -1):
            c = d * 128
            if n % d == 0 and c <= tk and vmem_bytes(c, acc=True) <= K_TILE_THRESHOLD:
                TK = c
                break
        grid = (Hp // TN, Bp // TM, Dp // TK)
        out = pl.pallas_call(
            dense_kernel_ktiled,
            out_shape=jax.ShapeDtypeStruct((Bp, Hp), out_dtype),
            grid_spec=pltpu.PrefetchScalarGridSpec(
                num_scalar_prefetch=0,
                grid=grid,
                in_specs=[
                    pl.BlockSpec((TM, TK), lambda j, i, k: (i, k)),
                    pl.BlockSpec((TK, TN), lambda j, i, k: (k, j)),
                    pl.BlockSpec((1, TN), lambda j, i, k: (0, j)),
                ],
                out_specs=pl.BlockSpec((TM, TN), lambda j, i, k: (i, j)),
                scratch_shapes=[pltpu.VMEM((TM, TN), jnp.float32)],
            ),
            compiler_params=pltpu.CompilerParams(
                dimension_semantics=("parallel", "parallel", "arbitrary"),
                vmem_limit_bytes=min(int(vmem_bytes(TK, acc=True) * 1.5) + (1 << 20),
                                     VMEM_CAP),
            ),
            cost_estimate=cost,
        )(xp, w_pad, b_pad)

    if B == Bp and H == Hp:
        return out
    return out[:B, :H]


if __name__ == "__main__":
    # Small shapes consistent with the module (input_dim1 == input_dim2 == D
    # is required for the PyTorch forward to typecheck).
    B, D, H = 8, 16, 32

    key = jax.random.PRNGKey(0)
    kx, kw1, kw2, kwv, kbv = jax.random.split(key, 5)

    x = jax.random.normal(kx, (B, D), dtype=jnp.float32)

    # Deterministic synthetic parameters (shapes match the module __init__).
    W1 = jax.random.normal(kw1, (D, H), dtype=jnp.float32)        # (input_dim1, hidden_dim)
    W2 = jax.random.normal(kw2, (D, H), dtype=jnp.float32)        # (input_dim2, hidden_dim)
    b = jnp.zeros((H,), dtype=jnp.float32)                        # hidden_dim
    Wv = jax.random.normal(kwv, (D, D), dtype=jnp.float32) * 0.1  # nn.Linear weight (out, in)
    bv = jax.random.normal(kbv, (D,), dtype=jnp.float32) * 0.1    # nn.Linear bias

    # Pure-JAX reference (unfolded, exactly the PyTorch forward).
    y_ref = x @ Wv.T + bv
    ref = x @ W1 + y_ref @ W2 + b

    # 1) f32 compute path (bit-tight check).
    p_f32 = fold_dense_params(Wv.T, bv, W1, W2, b, compute_dtype=jnp.float32)
    out_f32 = jax.block_until_ready(dense_forward(x, p_f32, out_dtype=jnp.float32))
    assert out_f32.shape == (B, H)
    assert jnp.allclose(out_f32, ref, atol=1e-4, rtol=1e-4), "f32 mismatch vs reference"

    # 2) Default bf16 compute path (MXU-native on v6e/v7x, halves the W stream);
    #    looser tolerance because W_eff / x are rounded to bf16.
    p_bf16 = fold_dense_params(Wv.T, bv, W1, W2, b)   # compute_dtype=bfloat16
    out_bf16 = jax.block_until_ready(dense_forward(x, p_bf16, out_dtype=jnp.float32))
    assert out_bf16.shape == (B, H)
    assert jnp.allclose(out_bf16, ref, atol=1e-1, rtol=5e-2), "bf16 mismatch vs reference"

    print("KERNEL_OK")
</pallas_src>

<mosaic_0001>
module attributes {stable_mosaic.version = 11 : i64} {
  func.func @dense_kernel(%arg0: i32, %arg1: i32, %arg2: memref<8x128xf32, #tpu.memory_space<vmem>>, %arg3: memref<128x128xf32, #tpu.memory_space<vmem>>, %arg4: memref<1x128xf32, #tpu.memory_space<vmem>>, %arg5: memref<8x128xf32, #tpu.memory_space<vmem>>) attributes {dimension_semantics = [#tpu.dimension_semantics<parallel>, #tpu.dimension_semantics<parallel>], iteration_bounds = array<i64: 1, 1>, scalar_prefetch = 0 : i64, scratch_operands = 0 : i64, tpu.core_type = #tpu.core_type<tc>, window_params = [{transform_indices = @transform_0, window_bounds = array<i64: 8, 128>}, {transform_indices = @transform_1, window_bounds = array<i64: 128, 128>}, {transform_indices = @transform_2, window_bounds = array<i64: 1, 128>}, {transform_indices = @transform_3, window_bounds = array<i64: 8, 128>}]} {
    %c0 = arith.constant 0 : index
    %c0_0 = arith.constant 0 : index
    %0 = vector.load %arg2[%c0, %c0_0] : memref<8x128xf32, #tpu.memory_space<vmem>>, vector<8x128xf32>
    %c0_1 = arith.constant 0 : index
    %c0_2 = arith.constant 0 : index
    %1 = vector.load %arg3[%c0_1, %c0_2] : memref<128x128xf32, #tpu.memory_space<vmem>>, vector<128x128xf32>
    %cst = arith.constant dense<0.000000e+00> : vector<8x128xf32>
    %2 = tpu.matmul %0, %1, %cst {dimension_numbers = #tpu.dot_dimension_numbers<[1], [0], [0], [1], [0, 0, 1, 1], [], []>} : vector<8x128xf32>, vector<128x128xf32>, vector<8x128xf32> -> vector<8x128xf32>
    %c0_3 = arith.constant 0 : index
    %c0_4 = arith.constant 0 : index
    %3 = vector.load %arg4[%c0_3, %c0_4] : memref<1x128xf32, #tpu.memory_space<vmem>>, vector<1x128xf32>
    %4 = vector.broadcast %3 : vector<1x128xf32> to vector<8x128xf32>
    %5 = arith.addf %2, %4 : vector<8x128xf32>
    %c0_5 = arith.constant 0 : index
    %c0_6 = arith.constant 0 : index
    %6 = vector.load %arg5[%c0_5, %c0_6] : memref<8x128xf32, #tpu.memory_space<vmem>>, vector<8x128xf32>
    tpu.vector_store %arg5[%c0_5, %c0_6], %5 {strides = array<i32>} : memref<8x128xf32, #tpu.memory_space<vmem>>, vector<8x128xf32>,
    return
  }
  func.func @transform_0(%arg0: i32, %arg1: i32) -> (i32, i32) {
    %c0_i32 = arith.constant 0 : i32
    %c0_i32_0 = arith.constant 0 : i32
    return %arg1, %c0_i32 : i32, i32
  }
  func.func @transform_1(%arg0: i32, %arg1: i32) -> (i32, i32) {
    %c0_i32 = arith.constant 0 : i32
    %c0_i32_0 = arith.constant 0 : i32
    return %c0_i32, %arg0 : i32, i32
  }
  func.func @transform_2(%arg0: i32, %arg1: i32) -> (i32, i32) {
    %c0_i32 = arith.constant 0 : i32
    %c0_i32_0 = arith.constant 0 : i32
    return %c0_i32, %arg0 : i32, i32
  }
  func.func @transform_3(%arg0: i32, %arg1: i32) -> (i32, i32) {
    %c0_i32 = arith.constant 0 : i32
    return %arg1, %arg0 : i32, i32
  }
}

</mosaic_0001>

<llo_original>
// kernel: tpu_custom_call.1
$region0: #{tpu_custom_call.1}
  #allocation0 [shape = 'u32[]', space=smem, size = 0x4, offset = 0x4, fixed_abs, tag = 'smem constant byte address 0x4 - core index']
  #allocation1 [shape = 'u32[72,128]{1,0:T(1,128)}', space=vmem, size = 0x9000, scoped, tag = 'internal scratch']
  %s0 = inlined_call_operand.hbm [shape: f32[8,128], index: 0, kind: input, shape index: {}]
  %s1 = inlined_call_operand.hbm [shape: f32[128,128], index: 1, kind: input, shape index: {}]
  %s2 = inlined_call_operand.vmem [shape: f32[1,128], index: 2, kind: input, shape index: {}]
  %s3 = inlined_call_operand.hbm [shape: f32[8,128], index: 3, kind: output, shape index: {}]
  %s4 = sld [smem:[#allocation0]]
  $region30: #{tpu_custom_call.1} parent=0
    _
  %s6 = ssub.s32 1, %s4
  %s7 = scalar_select 0, %s6, %s4
  $region1: #{tpu_custom_call.1} parent=0
    #allocation2 [shape = 'u8[4096]{0}', space=vmem, size = 0x1000, scoped, tag = 'input window, operand 0, single buffered']
    #allocation3 [shape = 's32[1]{0}', space=sflag, size = 0x4, scoped, tag = 'scoped memory for tpu_custom_call.1']
    #allocation4 [shape = 's32[1]{0}', space=sflag, size = 0x4, scoped, tag = 'scoped memory for tpu_custom_call.1']
    #allocation5 [shape = 'u8[65536]{0}', space=vmem, size = 0x10000, scoped, tag = 'input window, operand 1, single buffered']
    #allocation6 [shape = 's32[1]{0}', space=sflag, size = 0x4, scoped, tag = 'scoped memory for tpu_custom_call.1']
    #allocation7 [shape = 'u8[4096]{0}', space=vmem, size = 0x1000, scoped, tag = 'output window, operand 0, single buffered']
    %8 = vsyncpa [#allocation3], 0
    %9 = vsyncpa [#allocation6], 0
    %10 = vsyncpa [#allocation4], 0
    // Predicated region
    $region2: #{tpu_custom_call.1} parent=1 // pred_check
      _
    $region3: #{tpu_custom_call.1} parent=1 // pred_check_branch
      %12 = sbr.rel (0) target = $region5
    $region4: #{tpu_custom_call.1} parent=1 // pred_region
      %14 = vsyncadd [#allocation3], 0
      %s16 = sshll.u32 %s0, 4
      %s17 = int_to_ptr.hbm [resolvable:$true] %s16
      %s18 = sshll.u32 [#allocation2], 4
      %s19 = int_to_ptr.vmem [resolvable:$true] %s18
      %21 = dma.hbm_to_vmem [thread:$0]  %s17, 128, %s19, [#allocation3]
    $region5: #{tpu_custom_call.1} parent=1 // pred_fallthru
      _
    // Predicated region
    $region6: #{tpu_custom_call.1} parent=1 // pred_check
      _
    $region7: #{tpu_custom_call.1} parent=1 // pred_check_branch
      %23 = sbr.rel (0) target = $region9
    $region8: #{tpu_custom_call.1} parent=1 // pred_region
      %25 = vsyncadd [#allocation6], 0
      %s26 = sshll.u32 %s1, 4
      %s27 = int_to_ptr.hbm [resolvable:$true] %s26
      %s28 = sshll.u32 [#allocation5], 4
      %s29 = int_to_ptr.vmem [resolvable:$true] %s28
      %34 = dma.hbm_to_vmem [thread:$0]  %s27, 2048, %s29, [#allocation6], 128, 128, 8
    $region9: #{tpu_custom_call.1} parent=1 // pred_fallthru
      _
    // Predicated region
    $region10: #{tpu_custom_call.1} parent=1 // pred_check
      _
    $region11: #{tpu_custom_call.1} parent=1 // pred_check_branch
      %36 = sbr.rel (0) target = $region13
    $region12: #{tpu_custom_call.1} parent=1 // pred_region
      _
    $region13: #{tpu_custom_call.1} parent=1 // pred_fallthru
      _
    // Predicated region
    $region14: #{tpu_custom_call.1} parent=1 // pred_check
      _
    $region15: #{tpu_custom_call.1} parent=1 // pred_check_branch
      %38 = sbr.rel (0) target = $region17
    $region16: #{tpu_custom_call.1} parent=1 // pred_region
      %40 = dma.done [#allocation3], 128
    $region17: #{tpu_custom_call.1} parent=1 // pred_fallthru
      _
    // Predicated region
    $region18: #{tpu_custom_call.1} parent=1 // pred_check
      _
    $region19: #{tpu_custom_call.1} parent=1 // pred_check_branch
      %42 = sbr.rel (0) target = $region21
    $region20: #{tpu_custom_call.1} parent=1 // pred_region
      %44 = dma.done [#allocation6], 2048
    $region21: #{tpu_custom_call.1} parent=1 // pred_fallthru
      _
    %v45 = vld [vmem:[#allocation2] sm:$0xff]
    %v46 = vld [vmem:[#allocation5] sm:$0xff]
    %v47 = vld [vmem:[#allocation5 + $0x8] sm:$0xff]
    %v48 = vld [vmem:[#allocation5 + $0x10] sm:$0xff]
    %v49 = vld [vmem:[#allocation5 + $0x18] sm:$0xff]
    %v50 = vld [vmem:[#allocation5 + $0x20] sm:$0xff]
    %v51 = vld [vmem:[#allocation5 + $0x28] sm:$0xff]
    %v52 = vld [vmem:[#allocation5 + $0x30] sm:$0xff]
    %v53 = vld [vmem:[#allocation5 + $0x38] sm:$0xff]
    %v54 = vld [vmem:[#allocation5 + $0x40] sm:$0xff]
    %v55 = vld [vmem:[#allocation5 + $0x48] sm:$0xff]
    %v56 = vld [vmem:[#allocation5 + $0x50] sm:$0xff]
    %v57 = vld [vmem:[#allocation5 + $0x58] sm:$0xff]
    %v58 = vld [vmem:[#allocation5 + $0x60] sm:$0xff]
    %v59 = vld [vmem:[#allocation5 + $0x68] sm:$0xff]
    %v60 = vld [vmem:[#allocation5 + $0x70] sm:$0xff]
    %v61 = vld [vmem:[#allocation5 + $0x78] sm:$0xff]
    %v62 = vld [vmem:[%s2] sm:$0x1]
    %v64 = vperm.slane %v62, 0
    %66 = vmatpush.msra.mxu0 %v61
    %67 = vmatpush.msra.mxu0 %v60
    %68 = vmatpush.msra.mxu0 %v59
    %69 = vmatpush.msra.mxu0 %v58
    %70 = vmatpush.msra.mxu0 %v57
    %71 = vmatpush.msra.mxu0 %v56
    %72 = vmatpush.msra.mxu0 %v55
    %73 = vmatpush.msra.mxu0 %v54
    %74 = vmatpush.msra.mxu0 %v53
    %75 = vmatpush.msra.mxu0 %v52
    %76 = vmatpush.msra.mxu0 %v51
    %77 = vmatpush.msra.mxu0 %v50
    %78 = vmatpush.msra.mxu0 %v49
    %79 = vmatpush.msra.mxu0 %v48
    %80 = vmatpush.msra.mxu0 %v47
    %81 = vmatpush.msra.mxu0 %v46
    %82 = vmatmul.f32.gmra.mxu0 %v45
    %v83 = vpop.f32.mrf.mxu0
    %v84 = vadd.f32 %v64, %v83
    %85 = vdwg.mxu0
    %86 = vst [vmem:[#allocation7] sm:$0xff] %v84
    // Predicated region
    $region22: #{tpu_custom_call.1} parent=1 // pred_check
      _
    $region23: #{tpu_custom_call.1} parent=1 // pred_check_branch
      %88 = sbr.rel (0) target = $region25
    $region24: #{tpu_custom_call.1} parent=1 // pred_region
      %90 = vsyncadd [#allocation4], 0
      %s92 = sshll.u32 [#allocation7], 4
      %s93 = int_to_ptr.vmem [resolvable:$true] %s92
      %s94 = sshll.u32 %s3, 4
      %s95 = int_to_ptr.hbm [resolvable:$true] %s94
      %97 = dma.vmem_to_hbm [thread:$0]  %s93, 128, %s95, [#allocation4]
    $region25: #{tpu_custom_call.1} parent=1 // pred_fallthru
      _
    // Predicated region
    $region26: #{tpu_custom_call.1} parent=1 // pred_check
      _
    $region27: #{tpu_custom_call.1} parent=1 // pred_check_branch
      %99 = sbr.rel (0) target = $region29
    $region28: #{tpu_custom_call.1} parent=1 // pred_region
      %101 = dma.done [#allocation4], 128
    $region29: #{tpu_custom_call.1} parent=1 // pred_fallthru
      _
    %102 = vsyncpa [#allocation3], 1
    %103 = vsyncpa [#allocation6], 1
    %104 = vsyncpa [#allocation4], 1

</llo_original>
